<compile_context>
chip_gen: v5e
topology: v5e:2x2
jax: 0.10.0
libtpu: 0.0.40
codegen_flags: <defaults>
</compile_context>

<pallas_src>
import functools

import jax
import jax.numpy as jnp
from jax.experimental import pallas as pl
from jax.experimental.pallas import tpu as pltpu


def _scse_kernel(x_ref, w1_ref, b1_ref, w2_ref, b2_ref, ws_ref, o_ref, *, bt, inv_hw):
    # Small parameters: load once, reuse across the fused batch tile.
    w1 = w1_ref[...]          # (hid, C)
    b1 = b1_ref[...]          # (hid, 1)
    w2 = w2_ref[...]          # (C, hid)
    b2 = b2_ref[...]          # (C, 1)
    ws = ws_ref[...]          # (C, 1)   spatial 1x1-conv weight as a column

    for b in range(bt):       # static unroll over the fused batch tile
        xn = x_ref[b]                                   # (C, HWp), native dtype
        xf = xn.astype(jnp.float32)

        # ---- channel squeeze: global average pool over H*W (lane reduction).
        # Padded lanes are zero, so sum * (1 / true_HW) == unpadded mean.
        mean = jnp.sum(xf, axis=1, keepdims=True) * inv_hw            # (C, 1)

        # ---- channel excitation MLP: Linear -> ReLU -> Linear -> sigmoid.
        h = jnp.maximum(
            jnp.dot(w1, mean, preferred_element_type=jnp.float32) + b1, 0.0)
        chn = jax.nn.sigmoid(
            jnp.dot(w2, h, preferred_element_type=jnp.float32) + b2)  # (C, 1)

        # ---- spatial SE: 1x1 conv (C -> 1, no bias) as a VPU multiply plus a
        # cross-sublane (XLU) reduction instead of a degenerate M=1 matmul, so
        # the MXU / result-FIFO latency stays off the critical path.
        spa = jax.nn.sigmoid(
            jnp.sum(xf * ws, axis=0, keepdims=True))                  # (1, HWp)

        # ---- factored gating: x*chn + x*spa == x*(chn + spa): one add + one
        # mul per element.  Gate is cast to the I/O dtype so bf16 inputs keep
        # the full-tile multiply/store in bf16 (halved vreg/HBM traffic).
        gate = (chn + spa).astype(xn.dtype)                           # (C, HWp)
        o_ref[b] = (xn * gate).astype(o_ref.dtype)


def _choose_batch_tile(B, per_batch_bytes, target_bytes=4 << 20, max_unroll=16):
    """Largest divisor of B whose fused block stays under `target_bytes`.

    Blocks of ~1-8 MiB amortize the ~0.35us per-grid-step pipeline overhead.
    When individual batch slices are already >=1 MiB we keep >=2 grid steps so
    both v7x TensorCores get work on the 'parallel' grid axis.
    """
    cands = [d for d in range(1, min(B, max_unroll) + 1)
             if B % d == 0 and d * per_batch_bytes <= target_bytes]
    bt = max(cands) if cands else 1
    if B > 1 and B // bt < 2 and per_batch_bytes >= (1 << 20):
        two_step = [d for d in cands if B // d >= 2]
        if two_step:
            bt = max(two_step)
    return bt


def scse_block(x, w1, b1, w2, b2, ws):
    """x: (B, C, H, W).  Weights follow PyTorch Linear/Conv2d conventions."""
    B, C, H, W = x.shape
    hid = w1.shape[0]
    HW = H * W
    HWp = ((HW + 127) // 128) * 128            # lane-dense spatial extent

    x2 = x.reshape(B, C, HW)
    if HWp != HW:
        x2 = jnp.pad(x2, ((0, 0), (0, 0), (0, HWp - HW)))

    per_batch_bytes = C * HWp * jnp.dtype(x.dtype).itemsize
    bt = _choose_batch_tile(B, per_batch_bytes)
    grid = (B // bt,)

    b1c = b1.reshape(hid, 1)
    b2c = b2.reshape(C, 1)
    wsc = ws.reshape(C, 1)                     # Conv2d(C,1,1) weight (1,C,1,1) -> (C,1)

    kernel = functools.partial(_scse_kernel, bt=bt, inv_hw=float(1.0 / HW))

    out = pl.pallas_call(
        kernel,
        out_shape=jax.ShapeDtypeStruct((B, C, HWp), x.dtype),
        grid_spec=pltpu.PrefetchScalarGridSpec(
            num_scalar_prefetch=0,
            grid=grid,
            in_specs=[
                pl.BlockSpec((bt, C, HWp), lambda b: (b, 0, 0)),   # x (fused batch tile)
                pl.BlockSpec((hid, C), lambda b: (0, 0)),          # w1
                pl.BlockSpec((hid, 1), lambda b: (0, 0)),          # b1
                pl.BlockSpec((C, hid), lambda b: (0, 0)),          # w2
                pl.BlockSpec((C, 1), lambda b: (0, 0)),            # b2
                pl.BlockSpec((C, 1), lambda b: (0, 0)),            # spatial conv weight
            ],
            out_specs=pl.BlockSpec((bt, C, HWp), lambda b: (b, 0, 0)),
        ),
        compiler_params=pltpu.CompilerParams(
            dimension_semantics=("parallel",),
            # Explicit limit: ~4 MiB blocks x (in + out) x double-buffering plus
            # weights stays well inside every generation's VMEM (incl. v7x 64 MiB).
            vmem_limit_bytes=40 * 1024 * 1024,
        ),
    )(x2, w1, b1c, w2, b2c, wsc)

    if HWp != HW:
        out = out[:, :, :HW]
    return out.reshape(B, C, H, W)


def scse_ref(x, w1, b1, w2, b2, ws):
    """Pure-JAX reference mirroring the PyTorch forward."""
    B, C, H, W = x.shape
    mean = jnp.mean(x, axis=(2, 3))                                  # (B, C)
    h = jnp.maximum(mean @ w1.T + b1, 0.0)                           # (B, hid)
    chn = jax.nn.sigmoid(h @ w2.T + b2)[:, :, None, None]            # (B, C, 1, 1)
    spa = jax.nn.sigmoid(
        jnp.einsum('bchw,c->bhw', x, ws.reshape(C)))[:, None, :, :]  # (B, 1, H, W)
    return x * chn + x * spa


if __name__ == "__main__":
    # Module config: channel=32, reduction=16 -> hidden=2 (channel//reduction).
    B, C, H, W = 2, 32, 16, 16
    reduction = 16
    hid = C // reduction

    key = jax.random.PRNGKey(0)
    kx, k1, k2, k3, k4, k5 = jax.random.split(key, 6)

    x = jax.random.normal(kx, (B, C, H, W), dtype=jnp.float32)

    # Deterministic synthetic parameters (shapes as in the PyTorch __init__).
    w1 = jax.random.normal(k1, (hid, C), dtype=jnp.float32) * 0.1     # Linear(C, hid).weight
    b1 = jax.random.normal(k2, (hid,), dtype=jnp.float32) * 0.1       # Linear(C, hid).bias
    w2 = jax.random.normal(k3, (C, hid), dtype=jnp.float32) * 0.1     # Linear(hid, C).weight
    b2 = jax.random.normal(k4, (C,), dtype=jnp.float32) * 0.1         # Linear(hid, C).bias
    ws = jax.random.normal(k5, (1, C, 1, 1), dtype=jnp.float32) * 0.1  # Conv2d(C,1,1).weight

    out = scse_block(x, w1, b1, w2, b2, ws)
    out = jax.block_until_ready(out)

    ref = scse_ref(x, w1, b1, w2, b2, ws)
    assert out.shape == (B, C, H, W)
    assert jnp.allclose(out, ref, atol=1e-5, rtol=1e-5), "mismatch vs reference"

    print("KERNEL_OK")
</pallas_src>

<mosaic_0001>
module attributes {stable_mosaic.version = 11 : i64} {
  func.func @_scse_kernel(%arg0: i32, %arg1: memref<2x32x256xf32, #tpu.memory_space<vmem>>, %arg2: memref<2x32xf32, #tpu.memory_space<vmem>>, %arg3: memref<2x1xf32, #tpu.memory_space<vmem>>, %arg4: memref<32x2xf32, #tpu.memory_space<vmem>>, %arg5: memref<32x1xf32, #tpu.memory_space<vmem>>, %arg6: memref<32x1xf32, #tpu.memory_space<vmem>>, %arg7: memref<2x32x256xf32, #tpu.memory_space<vmem>>) attributes {dimension_semantics = [#tpu.dimension_semantics<parallel>], iteration_bounds = array<i64: 1>, scalar_prefetch = 0 : i64, scratch_operands = 0 : i64, tpu.core_type = #tpu.core_type<tc>, window_params = [{transform_indices = @transform_0, window_bounds = array<i64: 2, 32, 256>}, {pipeline_mode = #tpu.pipeline_mode<synchronous>, transform_indices = @transform_1, window_bounds = array<i64: 2, 32>}, {pipeline_mode = #tpu.pipeline_mode<synchronous>, transform_indices = @transform_2, window_bounds = array<i64: 2, 1>}, {pipeline_mode = #tpu.pipeline_mode<synchronous>, transform_indices = @transform_3, window_bounds = array<i64: 32, 2>}, {pipeline_mode = #tpu.pipeline_mode<synchronous>, transform_indices = @transform_4, window_bounds = array<i64: 32, 1>}, {pipeline_mode = #tpu.pipeline_mode<synchronous>, transform_indices = @transform_5, window_bounds = array<i64: 32, 1>}, {transform_indices = @transform_6, window_bounds = array<i64: 2, 32, 256>}]} {
    %c0 = arith.constant 0 : index
    %c0_0 = arith.constant 0 : index
    %0 = vector.load %arg2[%c0, %c0_0] : memref<2x32xf32, #tpu.memory_space<vmem>>, vector<2x32xf32>
    %c0_1 = arith.constant 0 : index
    %c0_2 = arith.constant 0 : index
    %1 = vector.load %arg3[%c0_1, %c0_2] : memref<2x1xf32, #tpu.memory_space<vmem>>, vector<2x1xf32>
    %c0_3 = arith.constant 0 : index
    %c0_4 = arith.constant 0 : index
    %2 = vector.load %arg4[%c0_3, %c0_4] : memref<32x2xf32, #tpu.memory_space<vmem>>, vector<32x2xf32>
    %c0_5 = arith.constant 0 : index
    %c0_6 = arith.constant 0 : index
    %3 = vector.load %arg5[%c0_5, %c0_6] : memref<32x1xf32, #tpu.memory_space<vmem>>, vector<32x1xf32>
    %c0_7 = arith.constant 0 : index
    %c0_8 = arith.constant 0 : index
    %4 = vector.load %arg6[%c0_7, %c0_8] : memref<32x1xf32, #tpu.memory_space<vmem>>, vector<32x1xf32>
    %c0_9 = arith.constant 0 : index
    %c0_10 = arith.constant 0 : index
    %c0_11 = arith.constant 0 : index
    %5 = vector.load %arg1[%c0_9, %c0_10, %c0_11] : memref<2x32x256xf32, #tpu.memory_space<vmem>>, vector<1x32x256xf32>
    %6 = vector.shape_cast %5 : vector<1x32x256xf32> to vector<32x256xf32>
    %cst = arith.constant dense<0.000000e+00> : vector<32xf32>
    %7 = vector.multi_reduction <add>, %6, %cst [1] : vector<32x256xf32> to vector<32xf32>
    %8 = vector.shape_cast %7 : vector<32xf32> to vector<32x1xf32>
    %cst_12 = arith.constant 3.906250e-03 : f32
    %9 = vector.broadcast %cst_12 : f32 to vector<32x1xf32>
    %10 = arith.mulf %8, %9 : vector<32x1xf32>
    %cst_13 = arith.constant dense<0.000000e+00> : vector<2x1xf32>
    %11 = tpu.matmul %0, %10, %cst_13 {dimension_numbers = #tpu.dot_dimension_numbers<[1], [0], [0], [1], [0, 0, 1, 1], [], []>} : vector<2x32xf32>, vector<32x1xf32>, vector<2x1xf32> -> vector<2x1xf32>
    %12 = arith.addf %11, %1 : vector<2x1xf32>
    %cst_14 = arith.constant 0.000000e+00 : f32
    %13 = vector.broadcast %cst_14 : f32 to vector<2x1xf32>
    %14 = arith.maximumf %12, %13 : vector<2x1xf32>
    %cst_15 = arith.constant dense<0.000000e+00> : vector<32x1xf32>
    %15 = tpu.matmul %2, %14, %cst_15 {dimension_numbers = #tpu.dot_dimension_numbers<[1], [0], [0], [1], [0, 0, 1, 1], [], []>} : vector<32x2xf32>, vector<2x1xf32>, vector<32x1xf32> -> vector<32x1xf32>
    %16 = arith.addf %15, %3 : vector<32x1xf32>
    %17 = arith.negf %16 : vector<32x1xf32>
    %18 = math.exp %17 : vector<32x1xf32>
    %cst_16 = arith.constant 1.000000e+00 : f32
    %19 = vector.broadcast %cst_16 : f32 to vector<32x1xf32>
    %20 = arith.addf %19, %18 : vector<32x1xf32>
    %21 = arith.divf %19, %20 : vector<32x1xf32>
    %22 = vector.broadcast %4 : vector<32x1xf32> to vector<32x256xf32>
    %23 = arith.mulf %6, %22 : vector<32x256xf32>
    %cst_17 = arith.constant dense<0.000000e+00> : vector<256xf32>
    %24 = vector.multi_reduction <add>, %23, %cst_17 [0] : vector<32x256xf32> to vector<256xf32>
    %25 = vector.shape_cast %24 : vector<256xf32> to vector<1x256xf32>
    %26 = arith.negf %25 : vector<1x256xf32>
    %27 = math.exp %26 : vector<1x256xf32>
    %cst_18 = arith.constant 1.000000e+00 : f32
    %28 = vector.broadcast %cst_18 : f32 to vector<1x256xf32>
    %29 = arith.addf %28, %27 : vector<1x256xf32>
    %30 = arith.divf %28, %29 : vector<1x256xf32>
    %31 = vector.broadcast %21 : vector<32x1xf32> to vector<32x256xf32>
    %32 = vector.broadcast %30 : vector<1x256xf32> to vector<32x256xf32>
    %33 = arith.addf %31, %32 : vector<32x256xf32>
    %34 = arith.mulf %6, %33 : vector<32x256xf32>
    %c0_19 = arith.constant 0 : index
    %c0_20 = arith.constant 0 : index
    %c0_21 = arith.constant 0 : index
    %35 = vector.load %arg7[%c0_19, %c0_20, %c0_21] : memref<2x32x256xf32, #tpu.memory_space<vmem>>, vector<1x32x256xf32>
    %36 = vector.shape_cast %35 : vector<1x32x256xf32> to vector<32x256xf32>
    %37 = vector.shape_cast %34 : vector<32x256xf32> to vector<1x32x256xf32>
    tpu.vector_store %arg7[%c0_19, %c0_20, %c0_21], %37 {strides = array<i32>} : memref<2x32x256xf32, #tpu.memory_space<vmem>>, vector<1x32x256xf32>,
    %c1 = arith.constant 1 : index
    %c0_22 = arith.constant 0 : index
    %c0_23 = arith.constant 0 : index
    %38 = vector.load %arg1[%c1, %c0_22, %c0_23] : memref<2x32x256xf32, #tpu.memory_space<vmem>>, vector<1x32x256xf32>
    %39 = vector.shape_cast %38 : vector<1x32x256xf32> to vector<32x256xf32>
    %cst_24 = arith.constant dense<0.000000e+00> : vector<32xf32>
    %40 = vector.multi_reduction <add>, %39, %cst_24 [1] : vector<32x256xf32> to vector<32xf32>
    %41 = vector.shape_cast %40 : vector<32xf32> to vector<32x1xf32>
    %cst_25 = arith.constant 3.906250e-03 : f32
    %42 = vector.broadcast %cst_25 : f32 to vector<32x1xf32>
    %43 = arith.mulf %41, %42 : vector<32x1xf32>
    %cst_26 = arith.constant dense<0.000000e+00> : vector<2x1xf32>
    %44 = tpu.matmul %0, %43, %cst_26 {dimension_numbers = #tpu.dot_dimension_numbers<[1], [0], [0], [1], [0, 0, 1, 1], [], []>} : vector<2x32xf32>, vector<32x1xf32>, vector<2x1xf32> -> vector<2x1xf32>
    %45 = arith.addf %44, %1 : vector<2x1xf32>
    %cst_27 = arith.constant 0.000000e+00 : f32
    %46 = vector.broadcast %cst_27 : f32 to vector<2x1xf32>
    %47 = arith.maximumf %45, %46 : vector<2x1xf32>
    %cst_28 = arith.constant dense<0.000000e+00> : vector<32x1xf32>
    %48 = tpu.matmul %2, %47, %cst_28 {dimension_numbers = #tpu.dot_dimension_numbers<[1], [0], [0], [1], [0, 0, 1, 1], [], []>} : vector<32x2xf32>, vector<2x1xf32>, vector<32x1xf32> -> vector<32x1xf32>
    %49 = arith.addf %48, %3 : vector<32x1xf32>
    %50 = arith.negf %49 : vector<32x1xf32>
    %51 = math.exp %50 : vector<32x1xf32>
    %cst_29 = arith.constant 1.000000e+00 : f32
    %52 = vector.broadcast %cst_29 : f32 to vector<32x1xf32>
    %53 = arith.addf %52, %51 : vector<32x1xf32>
    %54 = arith.divf %52, %53 : vector<32x1xf32>
    %55 = vector.broadcast %4 : vector<32x1xf32> to vector<32x256xf32>
    %56 = arith.mulf %39, %55 : vector<32x256xf32>
    %cst_30 = arith.constant dense<0.000000e+00> : vector<256xf32>
    %57 = vector.multi_reduction <add>, %56, %cst_30 [0] : vector<32x256xf32> to vector<256xf32>
    %58 = vector.shape_cast %57 : vector<256xf32> to vector<1x256xf32>
    %59 = arith.negf %58 : vector<1x256xf32>
    %60 = math.exp %59 : vector<1x256xf32>
    %cst_31 = arith.constant 1.000000e+00 : f32
    %61 = vector.broadcast %cst_31 : f32 to vector<1x256xf32>
    %62 = arith.addf %61, %60 : vector<1x256xf32>
    %63 = arith.divf %61, %62 : vector<1x256xf32>
    %64 = vector.broadcast %54 : vector<32x1xf32> to vector<32x256xf32>
    %65 = vector.broadcast %63 : vector<1x256xf32> to vector<32x256xf32>
    %66 = arith.addf %64, %65 : vector<32x256xf32>
    %67 = arith.mulf %39, %66 : vector<32x256xf32>
    %c1_32 = arith.constant 1 : index
    %c0_33 = arith.constant 0 : index
    %c0_34 = arith.constant 0 : index
    %68 = vector.load %arg7[%c1_32, %c0_33, %c0_34] : memref<2x32x256xf32, #tpu.memory_space<vmem>>, vector<1x32x256xf32>
    %69 = vector.shape_cast %68 : vector<1x32x256xf32> to vector<32x256xf32>
    %70 = vector.shape_cast %67 : vector<32x256xf32> to vector<1x32x256xf32>
    tpu.vector_store %arg7[%c1_32, %c0_33, %c0_34], %70 {strides = array<i32>} : memref<2x32x256xf32, #tpu.memory_space<vmem>>, vector<1x32x256xf32>,
    return
  }
  func.func @transform_0(%arg0: i32) -> (i32, i32, i32) {
    %c0_i32 = arith.constant 0 : i32
    %c0_i32_0 = arith.constant 0 : i32
    %c0_i32_1 = arith.constant 0 : i32
    return %arg0, %c0_i32, %c0_i32_0 : i32, i32, i32
  }
  func.func @transform_1(%arg0: i32) -> (i32, i32) {
    %c0_i32 = arith.constant 0 : i32
    %c0_i32_0 = arith.constant 0 : i32
    %c0_i32_1 = arith.constant 0 : i32
    return %c0_i32, %c0_i32_0 : i32, i32
  }
  func.func @transform_2(%arg0: i32) -> (i32, i32) {
    %c0_i32 = arith.constant 0 : i32
    %c0_i32_0 = arith.constant 0 : i32
    %c0_i32_1 = arith.constant 0 : i32
    return %c0_i32, %c0_i32_0 : i32, i32
  }
  func.func @transform_3(%arg0: i32) -> (i32, i32) {
    %c0_i32 = arith.constant 0 : i32
    %c0_i32_0 = arith.constant 0 : i32
    %c0_i32_1 = arith.constant 0 : i32
    return %c0_i32, %c0_i32_0 : i32, i32
  }
  func.func @transform_4(%arg0: i32) -> (i32, i32) {
    %c0_i32 = arith.constant 0 : i32
    %c0_i32_0 = arith.constant 0 : i32
    %c0_i32_1 = arith.constant 0 : i32
    return %c0_i32, %c0_i32_0 : i32, i32
  }
  func.func @transform_5(%arg0: i32) -> (i32, i32) {
    %c0_i32 = arith.constant 0 : i32
    %c0_i32_0 = arith.constant 0 : i32
    %c0_i32_1 = arith.constant 0 : i32
    return %c0_i32, %c0_i32_0 : i32, i32
  }
  func.func @transform_6(%arg0: i32) -> (i32, i32, i32) {
    %c0_i32 = arith.constant 0 : i32
    %c0_i32_0 = arith.constant 0 : i32
    %c0_i32_1 = arith.constant 0 : i32
    return %arg0, %c0_i32, %c0_i32_0 : i32, i32, i32
  }
}

</mosaic_0001>

<llo_original>
// kernel: tpu_custom_call.1
$region0: #{tpu_custom_call.1}
  #allocation0 [shape = 'u32[]', space=smem, size = 0x4, offset = 0x4, fixed_abs, tag = 'smem constant byte address 0x4 - core index']
  #allocation1 [shape = 'u32[72,128]{1,0:T(1,128)}', space=vmem, size = 0x9000, scoped, tag = 'internal scratch']
  %s0 = inlined_call_operand.hbm [shape: f32[2,32,256], index: 0, kind: input, shape index: {}]
  %s1 = inlined_call_operand.vmem [shape: f32[2,32], index: 1, kind: input, shape index: {}]
  %s2 = inlined_call_operand.vmem [shape: f32[2,1], index: 2, kind: input, shape index: {}]
  %s3 = inlined_call_operand.vmem [shape: f32[32,2], index: 3, kind: input, shape index: {}]
  %s4 = inlined_call_operand.vmem [shape: f32[32,1], index: 4, kind: input, shape index: {}]
  %s5 = inlined_call_operand.vmem [shape: f32[32,1], index: 5, kind: input, shape index: {}]
  %s6 = inlined_call_operand.hbm [shape: f32[2,32,256], index: 6, kind: output, shape index: {}]
  %s7 = sld [smem:[#allocation0]]
  $region38: #{tpu_custom_call.1} parent=0
    _
  %s9 = ssub.s32 1, %s7
  %s10 = scalar_select 0, %s9, %s7
  $region1: #{tpu_custom_call.1} parent=0
    #allocation2 [shape = 'u8[65536]{0}', space=vmem, size = 0x10000, scoped, tag = 'input window, operand 0, single buffered']
    #allocation3 [shape = 's32[1]{0}', space=sflag, size = 0x4, scoped, tag = 'scoped memory for tpu_custom_call.1']
    #allocation4 [shape = 's32[1]{0}', space=sflag, size = 0x4, scoped, tag = 'scoped memory for tpu_custom_call.1']
    #allocation5 [shape = 'u8[65536]{0}', space=vmem, size = 0x10000, scoped, tag = 'output window, operand 0, single buffered']
    %11 = vsyncpa [#allocation3], 0
    %12 = vsyncpa [#allocation4], 0
    // Predicated region
    $region2: #{tpu_custom_call.1} parent=1 // pred_check
      _
    $region3: #{tpu_custom_call.1} parent=1 // pred_check_branch
      %14 = sbr.rel (0) target = $region5
    $region4: #{tpu_custom_call.1} parent=1 // pred_region
      %16 = vsyncadd [#allocation3], 0
      %s17 = sshll.u32 %s0, 4
      %s18 = int_to_ptr.hbm [resolvable:$true] %s17
      %s19 = sshll.u32 [#allocation2], 4
      %s20 = int_to_ptr.vmem [resolvable:$true] %s19
      %25 = dma.hbm_to_vmem [thread:$0]  %s18, 2048, %s20, [#allocation3], 256, 256, 16
    $region5: #{tpu_custom_call.1} parent=1 // pred_fallthru
      _
    // Predicated region
    $region6: #{tpu_custom_call.1} parent=1 // pred_check
      _
    $region7: #{tpu_custom_call.1} parent=1 // pred_check_branch
      %27 = sbr.rel (0) target = $region9
    $region8: #{tpu_custom_call.1} parent=1 // pred_region
      _
    $region9: #{tpu_custom_call.1} parent=1 // pred_fallthru
      _
    // Predicated region
    $region10: #{tpu_custom_call.1} parent=1 // pred_check
      _
    $region11: #{tpu_custom_call.1} parent=1 // pred_check_branch
      %29 = sbr.rel (0) target = $region13
    $region12: #{tpu_custom_call.1} parent=1 // pred_region
      _
    $region13: #{tpu_custom_call.1} parent=1 // pred_fallthru
      _
    // Predicated region
    $region14: #{tpu_custom_call.1} parent=1 // pred_check
      _
    $region15: #{tpu_custom_call.1} parent=1 // pred_check_branch
      %31 = sbr.rel (0) target = $region17
    $region16: #{tpu_custom_call.1} parent=1 // pred_region
      _
    $region17: #{tpu_custom_call.1} parent=1 // pred_fallthru
      _
    // Predicated region
    $region18: #{tpu_custom_call.1} parent=1 // pred_check
      _
    $region19: #{tpu_custom_call.1} parent=1 // pred_check_branch
      %33 = sbr.rel (0) target = $region21
    $region20: #{tpu_custom_call.1} parent=1 // pred_region
      _
    $region21: #{tpu_custom_call.1} parent=1 // pred_fallthru
      _
    // Predicated region
    $region22: #{tpu_custom_call.1} parent=1 // pred_check
      _
    $region23: #{tpu_custom_call.1} parent=1 // pred_check_branch
      %35 = sbr.rel (0) target = $region25
    $region24: #{tpu_custom_call.1} parent=1 // pred_region
      _
    $region25: #{tpu_custom_call.1} parent=1 // pred_fallthru
      _
    // Predicated region
    $region26: #{tpu_custom_call.1} parent=1 // pred_check
      _
    $region27: #{tpu_custom_call.1} parent=1 // pred_check_branch
      %37 = sbr.rel (0) target = $region29
    $region28: #{tpu_custom_call.1} parent=1 // pred_region
      %39 = dma.done [#allocation3], 2048
    $region29: #{tpu_custom_call.1} parent=1 // pred_fallthru
      _
    %v40 = vld [vmem:[%s1] sm:$0x3]
    %v41 = vld [vmem:[%s2] sm:$0x3]
    %v42 = vld [vmem:[%s3] sm:$0xff]
    %v43 = vld [vmem:[%s3 + $0x8] sm:$0xff]
    %v44 = vld [vmem:[%s3 + $0x10] sm:$0xff]
    %v45 = vld [vmem:[%s3 + $0x18] sm:$0xff]
    %v46 = vld [vmem:[%s4] sm:$0xff]
    %v47 = vld [vmem:[%s4 + $0x8] sm:$0xff]
    %v48 = vld [vmem:[%s4 + $0x10] sm:$0xff]
    %v49 = vld [vmem:[%s4 + $0x18] sm:$0xff]
    %v50 = vld [vmem:[%s5] sm:$0xff]
    %v51 = vld [vmem:[%s5 + $0x8] sm:$0xff]
    %v52 = vld [vmem:[%s5 + $0x10] sm:$0xff]
    %v53 = vld [vmem:[%s5 + $0x18] sm:$0xff]
    %v54 = vld [vmem:[#allocation2] sm:$0xff]
    %v55 = vld [vmem:[#allocation2 + $0x8] sm:$0xff]
    %v56 = vld [vmem:[#allocation2 + $0x10] sm:$0xff]
    %v57 = vld [vmem:[#allocation2 + $0x18] sm:$0xff]
    %v58 = vld [vmem:[#allocation2 + $0x20] sm:$0xff]
    %v59 = vld [vmem:[#allocation2 + $0x28] sm:$0xff]
    %v60 = vld [vmem:[#allocation2 + $0x30] sm:$0xff]
    %v61 = vld [vmem:[#allocation2 + $0x38] sm:$0xff]
    %v62 = vadd.f32 %v54, %v55
    %63 = vadd.xlane.f32.xlu0 %v62
    %v64 = vpop.xlane.xlu0 %63
    %v65 = vadd.f32 %v56, %v57
    %66 = vadd.xlane.f32.xlu0 %v65
    %v67 = vpop.xlane.xlu0 %66
    %v68 = vadd.f32 %v58, %v59
    %69 = vadd.xlane.f32.xlu0 %v68
    %v70 = vpop.xlane.xlu0 %69
    %v71 = vadd.f32 %v60, %v61
    %72 = vadd.xlane.f32.xlu0 %v71
    %v73 = vpop.xlane.xlu0 %72
    %v74 = vmul.f32 %v64, 0.00390625
    %v75 = vmul.f32 %v67, 0.00390625
    %v76 = vmul.f32 %v70, 0.00390625
    %v77 = vmul.f32 %v73, 0.00390625
    %vm78 = vcmask 261120
    %v80 = vsel %vm78, %v40, 0
    %82 = vmatpush.msra.mxu0 0.0
    %83 = vmatpush.msra.mxu0 0.0
    %84 = vmatpush.msra.mxu0 0.0
    %85 = vmatpush.msra.mxu0 0.0
    %86 = vmatpush.msra.mxu0 0.0
    %87 = vmatpush.msra.mxu0 0.0
    %88 = vmatpush.msra.mxu0 0.0
    %89 = vmatpush.msra.mxu0 0.0
    %90 = vmatpush.msra.mxu0 0.0
    %91 = vmatpush.msra.mxu0 0.0
    %92 = vmatpush.msra.mxu0 0.0
    %93 = vmatpush.msra.mxu0 0.0
    %94 = vmatpush.msra.mxu0 %v77
    %95 = vmatpush.msra.mxu0 %v76
    %96 = vmatpush.msra.mxu0 %v75
    %97 = vmatpush.msra.mxu0 %v74
    %98 = vmatmul.f32.gmra.mxu0 %v80
    %v99 = vpop.f32.mrf.mxu0
    %v100 = vadd.f32 %v41, %v99
    %101 = vdwg.mxu0
    %v102 = vmax.f32 %v100, 0.0
    %vm103 = vcmask 15360
    %v105 = vsel %vm103, %v42, 0
    %v108 = vsel %vm103, %v43, 0
    %v111 = vsel %vm103, %v44, 0
    %v114 = vsel %vm103, %v45, 0
    %vm116 = vcmask 1041408
    %v118 = vsel %vm116, %v102, 0
    %120 = vmatpush.msra.mxu0 0.0
    %121 = vmatpush.msra.mxu0 0.0
    %122 = vmatpush.msra.mxu0 0.0
    %123 = vmatpush.msra.mxu0 0.0
    %124 = vmatpush.msra.mxu0 0.0
    %125 = vmatpush.msra.mxu0 0.0
    %126 = vmatpush.msra.mxu0 0.0
    %127 = vmatpush.msra.mxu0 0.0
    %128 = vmatpush.msra.mxu0 0.0
    %129 = vmatpush.msra.mxu0 0.0
    %130 = vmatpush.msra.mxu0 0.0
    %131 = vmatpush.msra.mxu0 0.0
    %132 = vmatpush.msra.mxu0 0.0
    %133 = vmatpush.msra.mxu0 0.0
    %134 = vmatpush.msra.mxu0 0.0
    %135 = vmatpush.msra.mxu0 %v118
    %136 = vmatmul.f32.gmra.mxu0 %v105
    %v137 = vpop.f32.mrf.mxu0
    %v138 = vadd.f32 %v46, %v137
    %139 = vmatmul.f32.gmra.mxu0 %v108
    %v140 = vpop.f32.mrf.mxu0
    %v141 = vadd.f32 %v47, %v140
    %142 = vmatmul.f32.gmra.mxu0 %v111
    %v143 = vpop.f32.mrf.mxu0
    %v144 = vadd.f32 %v48, %v143
    %145 = vmatmul.f32.gmra.mxu0 %v114
    %v146 = vpop.f32.mrf.mxu0
    %v147 = vadd.f32 %v49, %v146
    %148 = vdwg.mxu0
    %v149 = vxor.u32 %v138, 2147483648
    %v150 = vxor.u32 %v141, 2147483648
    %v151 = vxor.u32 %v144, 2147483648
    %v152 = vxor.u32 %v147, 2147483648
    %v153 = vmul.f32 %v149, 1.442695
    %v154 = vpow.pop %v153
    %v155 = vmul.f32 %v150, 1.442695
    %v156 = vpow.pop %v155
    %v157 = vmul.f32 %v151, 1.442695
    %v158 = vpow.pop %v157
    %v159 = vmul.f32 %v152, 1.442695
    %v160 = vpow.pop %v159
    %v161 = vadd.f32 %v154, 1.0
    %v162 = vadd.f32 %v156, 1.0
    %v163 = vadd.f32 %v158, 1.0
    %v164 = vadd.f32 %v160, 1.0
    %v165 = vrcp.pop %v161
    %v166 = vmul.f32 %v161, %v165
    %v167 = vsub.f32 1.0, %v166
    %v168 = vmul.f32 %v165, %v167
    %v169 = vadd.f32 %v165, %v168
    %vm170 = vweird.f32 %v161
    %vm171 = vweird.f32 %v165
    %vm172 = vmor %vm170, %vm171
    %v173 = vsel %vm172, %v165, %v169
    %v174 = vand.u32 2147483647, %v161
    %vm175 = vcmp.eq.f32.partialorder %v174, 8.507059e+37
    %v176 = vand.u32 %v161, 2147483648
    %v177 = vor.u32 1.1754944e-38, %v176
    %v178 = vsel %vm175, %v177, %v173
    %v179 = vmul.f32 1.0, %v178
    %v180 = vrcp.pop %v162
    %v181 = vmul.f32 %v162, %v180
    %v182 = vsub.f32 1.0, %v181
    %v183 = vmul.f32 %v180, %v182
    %v184 = vadd.f32 %v180, %v183
    %vm185 = vweird.f32 %v162
    %vm186 = vweird.f32 %v180
    %vm187 = vmor %vm185, %vm186
    %v188 = vsel %vm187, %v180, %v184
    %v189 = vand.u32 2147483647, %v162
    %vm190 = vcmp.eq.f32.partialorder %v189, 8.507059e+37
    %v191 = vand.u32 %v162, 2147483648
    %v192 = vor.u32 1.1754944e-38, %v191
    %v193 = vsel %vm190, %v192, %v188
    %v194 = vmul.f32 1.0, %v193
    %v195 = vrcp.pop %v163
    %v196 = vmul.f32 %v163, %v195
    %v197 = vsub.f32 1.0, %v196
    %v198 = vmul.f32 %v195, %v197
    %v199 = vadd.f32 %v195, %v198
    %vm200 = vweird.f32 %v163
    %vm201 = vweird.f32 %v195
    %vm202 = vmor %vm200, %vm201
    %v203 = vsel %vm202, %v195, %v199
    %v204 = vand.u32 2147483647, %v163
    %vm205 = vcmp.eq.f32.partialorder %v204, 8.507059e+37
    %v206 = vand.u32 %v163, 2147483648
    %v207 = vor.u32 1.1754944e-38, %v206
    %v208 = vsel %vm205, %v207, %v203
    %v209 = vmul.f32 1.0, %v208
    %v210 = vrcp.pop %v164
    %v211 = vmul.f32 %v164, %v210
    %v212 = vsub.f32 1.0, %v211
    %v213 = vmul.f32 %v210, %v212
    %v214 = vadd.f32 %v210, %v213
    %vm215 = vweird.f32 %v164
    %vm216 = vweird.f32 %v210
    %vm217 = vmor %vm215, %vm216
    %v218 = vsel %vm217, %v210, %v214
    %v219 = vand.u32 2147483647, %v164
    %vm220 = vcmp.eq.f32.partialorder %v219, 8.507059e+37
    %v221 = vand.u32 %v164, 2147483648
    %v222 = vor.u32 1.1754944e-38, %v221
    %v223 = vsel %vm220, %v222, %v218
    %v224 = vmul.f32 1.0, %v223
    %226 = vset.pattern.permute.xlu0 0
    %227 = vperm.xlu0 %226, %v50
    %v228 = vpop.permute.xlu0 %227
    %231 = vset.pattern.permute.xlu0 0
    %232 = vperm.xlu0 %231, %v51
    %v233 = vpop.permute.xlu0 %232
    %236 = vset.pattern.permute.xlu0 0
    %237 = vperm.xlu0 %236, %v52
    %v238 = vpop.permute.xlu0 %237
    %241 = vset.pattern.permute.xlu0 0
    %242 = vperm.xlu0 %241, %v53
    %v243 = vpop.permute.xlu0 %242
    %v245 = vmul.f32 %v54, %v228
    %v246 = vmul.f32 %v55, %v228
    %v247 = vmul.f32 %v56, %v233
    %v248 = vmul.f32 %v57, %v233
    %v249 = vmul.f32 %v58, %v238
    %v250 = vmul.f32 %v59, %v238
    %v251 = vmul.f32 %v60, %v243
    %v252 = vmul.f32 %v61, %v243
    %v253 = vadd.f32 %v245, %v247
    %v254 = vadd.f32 %v253, %v249
    %v255 = vadd.f32 %v254, %v251
    %v256 = vrot.slane %v255, 4
    %v257 = vadd.f32 %v255, %v256
    %v258 = vrot.slane %v257, 2
    %v259 = vadd.f32 %v257, %v258
    %v260 = vrot.slane %v259, 1
    %v261 = vadd.f32 %v259, %v260
    %v262 = vadd.f32 %v246, %v248
    %v263 = vadd.f32 %v262, %v250
    %v264 = vadd.f32 %v263, %v252
    %v265 = vrot.slane %v264, 4
    %v266 = vadd.f32 %v264, %v265
    %v267 = vrot.slane %v266, 2
    %v268 = vadd.f32 %v266, %v267
    %v269 = vrot.slane %v268, 1
    %v270 = vadd.f32 %v268, %v269
    %v271 = vxor.u32 %v261, 2147483648
    %v272 = vxor.u32 %v270, 2147483648
    %v273 = vmul.f32 %v271, 1.442695
    %v274 = vpow.pop %v273
    %v275 = vmul.f32 %v272, 1.442695
    %v276 = vpow.pop %v275
    %v277 = vadd.f32 %v274, 1.0
    %v278 = vadd.f32 %v276, 1.0
    %v279 = vrcp.pop %v277
    %v280 = vmul.f32 %v277, %v279
    %v281 = vsub.f32 1.0, %v280
    %v282 = vmul.f32 %v279, %v281
    %v283 = vadd.f32 %v279, %v282
    %vm284 = vweird.f32 %v277
    %vm285 = vweird.f32 %v279
    %vm286 = vmor %vm284, %vm285
    %v287 = vsel %vm286, %v279, %v283
    %v288 = vand.u32 2147483647, %v277
    %vm289 = vcmp.eq.f32.partialorder %v288, 8.507059e+37
    %v290 = vand.u32 %v277, 2147483648
    %v291 = vor.u32 1.1754944e-38, %v290
    %v292 = vsel %vm289, %v291, %v287
    %v293 = vmul.f32 1.0, %v292
    %v294 = vrcp.pop %v278
    %v295 = vmul.f32 %v278, %v294
    %v296 = vsub.f32 1.0, %v295
    %v297 = vmul.f32 %v294, %v296
    %v298 = vadd.f32 %v294, %v297
    %vm299 = vweird.f32 %v278
    %vm300 = vweird.f32 %v294
    %vm301 = vmor %vm299, %vm300
    %v302 = vsel %vm301, %v294, %v298
    %v303 = vand.u32 2147483647, %v278
    %vm304 = vcmp.eq.f32.partialorder %v303, 8.507059e+37
    %v305 = vand.u32 %v278, 2147483648
    %v306 = vor.u32 1.1754944e-38, %v305
    %v307 = vsel %vm304, %v306, %v302
    %v308 = vmul.f32 1.0, %v307
    %310 = vset.pattern.permute.xlu0 0
    %311 = vperm.xlu0 %310, %v179
    %v312 = vpop.permute.xlu0 %311
    %315 = vset.pattern.permute.xlu0 0
    %316 = vperm.xlu0 %315, %v194
    %v317 = vpop.permute.xlu0 %316
    %320 = vset.pattern.permute.xlu0 0
    %321 = vperm.xlu0 %320, %v209
    %v322 = vpop.permute.xlu0 %321
    %325 = vset.pattern.permute.xlu0 0
    %326 = vperm.xlu0 %325, %v224
    %v327 = vpop.permute.xlu0 %326
    %v329 = vadd.f32 %v312, %v293
    %v330 = vadd.f32 %v312, %v308
    %v331 = vadd.f32 %v317, %v293
    %v332 = vadd.f32 %v317, %v308
    %v333 = vadd.f32 %v322, %v293
    %v334 = vadd.f32 %v322, %v308
    %v335 = vadd.f32 %v327, %v293
    %v336 = vadd.f32 %v327, %v308
    %v337 = vmul.f32 %v54, %v329
    %v338 = vmul.f32 %v55, %v330
    %v339 = vmul.f32 %v56, %v331
    %v340 = vmul.f32 %v57, %v332
    %v341 = vmul.f32 %v58, %v333
    %v342 = vmul.f32 %v59, %v334
    %v343 = vmul.f32 %v60, %v335
    %v344 = vmul.f32 %v61, %v336
    %345 = vst [vmem:[#allocation5] sm:$0xff] %v337
    %346 = vst [vmem:[#allocation5 + $0x8] sm:$0xff] %v338
    %347 = vst [vmem:[#allocation5 + $0x10] sm:$0xff] %v339
    %348 = vst [vmem:[#allocation5 + $0x18] sm:$0xff] %v340
    %349 = vst [vmem:[#allocation5 + $0x20] sm:$0xff] %v341
    %350 = vst [vmem:[#allocation5 + $0x28] sm:$0xff] %v342
    %351 = vst [vmem:[#allocation5 + $0x30] sm:$0xff] %v343
    %352 = vst [vmem:[#allocation5 + $0x38] sm:$0xff] %v344
    %s353 = scalar_lea.vmem [#allocation2], 64
    %v354 = vld [vmem:[%s353] sm:$0xff]
    %v355 = vld [vmem:[%s353 + $0x8] sm:$0xff]
    %v356 = vld [vmem:[%s353 + $0x10] sm:$0xff]
    %v357 = vld [vmem:[%s353 + $0x18] sm:$0xff]
    %v358 = vld [vmem:[%s353 + $0x20] sm:$0xff]
    %v359 = vld [vmem:[%s353 + $0x28] sm:$0xff]
    %v360 = vld [vmem:[%s353 + $0x30] sm:$0xff]
    %v361 = vld [vmem:[%s353 + $0x38] sm:$0xff]
    %v362 = vadd.f32 %v354, %v355
    %363 = vadd.xlane.f32.xlu0 %v362
    %v364 = vpop.xlane.xlu0 %363
    %v365 = vadd.f32 %v356, %v357
    %366 = vadd.xlane.f32.xlu0 %v365
    %v367 = vpop.xlane.xlu0 %366
    %v368 = vadd.f32 %v358, %v359
    %369 = vadd.xlane.f32.xlu0 %v368
    %v370 = vpop.xlane.xlu0 %369
    %v371 = vadd.f32 %v360, %v361
    %372 = vadd.xlane.f32.xlu0 %v371
    %v373 = vpop.xlane.xlu0 %372
    %v374 = vmul.f32 %v364, 0.00390625
    %v375 = vmul.f32 %v367, 0.00390625
    %v376 = vmul.f32 %v370, 0.00390625
    %v377 = vmul.f32 %v373, 0.00390625
    %378 = vmatpush.msra.mxu0 0.0
    %379 = vmatpush.msra.mxu0 0.0
    %380 = vmatpush.msra.mxu0 0.0
    %381 = vmatpush.msra.mxu0 0.0
    %382 = vmatpush.msra.mxu0 0.0
    %383 = vmatpush.msra.mxu0 0.0
    %384 = vmatpush.msra.mxu0 0.0
    %385 = vmatpush.msra.mxu0 0.0
    %386 = vmatpush.msra.mxu0 0.0
    %387 = vmatpush.msra.mxu0 0.0
    %388 = vmatpush.msra.mxu0 0.0
    %389 = vmatpush.msra.mxu0 0.0
    %390 = vmatpush.msra.mxu0 %v377
    %391 = vmatpush.msra.mxu0 %v376
    %392 = vmatpush.msra.mxu0 %v375
    %393 = vmatpush.msra.mxu0 %v374
    %394 = vmatmul.f32.gmra.mxu0 %v80
    %v395 = vpop.f32.mrf.mxu0
    %v396 = vadd.f32 %v41, %v395
    %397 = vdwg.mxu0
    %v398 = vmax.f32 %v396, 0.0
    %v400 = vsel %vm116, %v398, 0
    %402 = vmatpush.msra.mxu0 0.0
    %403 = vmatpush.msra.mxu0 0.0
    %404 = vmatpush.msra.mxu0 0.0
    %405 = vmatpush.msra.mxu0 0.0
    %406 = vmatpush.msra.mxu0 0.0
    %407 = vmatpush.msra.mxu0 0.0
    %408 = vmatpush.msra.mxu0 0.0
    %409 = vmatpush.msra.mxu0 0.0
    %410 = vmatpush.msra.mxu0 0.0
    %411 = vmatpush.msra.mxu0 0.0
    %412 = vmatpush.msra.mxu0 0.0
    %413 = vmatpush.msra.mxu0 0.0
    %414 = vmatpush.msra.mxu0 0.0
    %415 = vmatpush.msra.mxu0 0.0
    %416 = vmatpush.msra.mxu0 0.0
    %417 = vmatpush.msra.mxu0 %v400
    %418 = vmatmul.f32.gmra.mxu0 %v105
    %v419 = vpop.f32.mrf.mxu0
    %v420 = vadd.f32 %v46, %v419
    %421 = vmatmul.f32.gmra.mxu0 %v108
    %v422 = vpop.f32.mrf.mxu0
    %v423 = vadd.f32 %v47, %v422
    %424 = vmatmul.f32.gmra.mxu0 %v111
    %v425 = vpop.f32.mrf.mxu0
    %v426 = vadd.f32 %v48, %v425
    %427 = vmatmul.f32.gmra.mxu0 %v114
    %v428 = vpop.f32.mrf.mxu0
    %v429 = vadd.f32 %v49, %v428
    %430 = vdwg.mxu0
    %v431 = vxor.u32 %v420, 2147483648
    %v432 = vxor.u32 %v423, 2147483648
    %v433 = vxor.u32 %v426, 2147483648
    %v434 = vxor.u32 %v429, 2147483648
    %v435 = vmul.f32 %v431, 1.442695
    %v436 = vpow.pop %v435
    %v437 = vmul.f32 %v432, 1.442695
    %v438 = vpow.pop %v437
    %v439 = vmul.f32 %v433, 1.442695
    %v440 = vpow.pop %v439
    %v441 = vmul.f32 %v434, 1.442695
    %v442 = vpow.pop %v441
    %v443 = vadd.f32 %v436, 1.0
    %v444 = vadd.f32 %v438, 1.0
    %v445 = vadd.f32 %v440, 1.0
    %v446 = vadd.f32 %v442, 1.0
    %v447 = vrcp.pop %v443
    %v448 = vmul.f32 %v443, %v447
    %v449 = vsub.f32 1.0, %v448
    %v450 = vmul.f32 %v447, %v449
    %v451 = vadd.f32 %v447, %v450
    %vm452 = vweird.f32 %v443
    %vm453 = vweird.f32 %v447
    %vm454 = vmor %vm452, %vm453
    %v455 = vsel %vm454, %v447, %v451
    %v456 = vand.u32 2147483647, %v443
    %vm457 = vcmp.eq.f32.partialorder %v456, 8.507059e+37
    %v458 = vand.u32 %v443, 2147483648
    %v459 = vor.u32 1.1754944e-38, %v458
    %v460 = vsel %vm457, %v459, %v455
    %v461 = vmul.f32 1.0, %v460
    %v462 = vrcp.pop %v444
    %v463 = vmul.f32 %v444, %v462
    %v464 = vsub.f32 1.0, %v463
    %v465 = vmul.f32 %v462, %v464
    %v466 = vadd.f32 %v462, %v465
    %vm467 = vweird.f32 %v444
    %vm468 = vweird.f32 %v462
    %vm469 = vmor %vm467, %vm468
    %v470 = vsel %vm469, %v462, %v466
    %v471 = vand.u32 2147483647, %v444
    %vm472 = vcmp.eq.f32.partialorder %v471, 8.507059e+37
    %v473 = vand.u32 %v444, 2147483648
    %v474 = vor.u32 1.1754944e-38, %v473
    %v475 = vsel %vm472, %v474, %v470
    %v476 = vmul.f32 1.0, %v475
    %v477 = vrcp.pop %v445
    %v478 = vmul.f32 %v445, %v477
    %v479 = vsub.f32 1.0, %v478
    %v480 = vmul.f32 %v477, %v479
    %v481 = vadd.f32 %v477, %v480
    %vm482 = vweird.f32 %v445
    %vm483 = vweird.f32 %v477
    %vm484 = vmor %vm482, %vm483
    %v485 = vsel %vm484, %v477, %v481
    %v486 = vand.u32 2147483647, %v445
    %vm487 = vcmp.eq.f32.partialorder %v486, 8.507059e+37
    %v488 = vand.u32 %v445, 2147483648
    %v489 = vor.u32 1.1754944e-38, %v488
    %v490 = vsel %vm487, %v489, %v485
    %v491 = vmul.f32 1.0, %v490
    %v492 = vrcp.pop %v446
    %v493 = vmul.f32 %v446, %v492
    %v494 = vsub.f32 1.0, %v493
    %v495 = vmul.f32 %v492, %v494
    %v496 = vadd.f32 %v492, %v495
    %vm497 = vweird.f32 %v446
    %vm498 = vweird.f32 %v492
    %vm499 = vmor %vm497, %vm498
    %v500 = vsel %vm499, %v492, %v496
    %v501 = vand.u32 2147483647, %v446
    %vm502 = vcmp.eq.f32.partialorder %v501, 8.507059e+37
    %v503 = vand.u32 %v446, 2147483648
    %v504 = vor.u32 1.1754944e-38, %v503
    %v505 = vsel %vm502, %v504, %v500
    %v506 = vmul.f32 1.0, %v505
    %v507 = vmul.f32 %v354, %v228
    %v508 = vmul.f32 %v355, %v228
    %v509 = vmul.f32 %v356, %v233
    %v510 = vmul.f32 %v357, %v233
    %v511 = vmul.f32 %v358, %v238
    %v512 = vmul.f32 %v359, %v238
    %v513 = vmul.f32 %v360, %v243
    %v514 = vmul.f32 %v361, %v243
    %v515 = vadd.f32 %v507, %v509
    %v516 = vadd.f32 %v515, %v511
    %v517 = vadd.f32 %v516, %v513
    %v518 = vrot.slane %v517, 4
    %v519 = vadd.f32 %v517, %v518
    %v520 = vrot.slane %v519, 2
    %v521 = vadd.f32 %v519, %v520
    %v522 = vrot.slane %v521, 1
    %v523 = vadd.f32 %v521, %v522
    %v524 = vadd.f32 %v508, %v510
    %v525 = vadd.f32 %v524, %v512
    %v526 = vadd.f32 %v525, %v514
    %v527 = vrot.slane %v526, 4
    %v528 = vadd.f32 %v526, %v527
    %v529 = vrot.slane %v528, 2
    %v530 = vadd.f32 %v528, %v529
    %v531 = vrot.slane %v530, 1
    %v532 = vadd.f32 %v530, %v531
    %v533 = vxor.u32 %v523, 2147483648
    %v534 = vxor.u32 %v532, 2147483648
    %v535 = vmul.f32 %v533, 1.442695
    %v536 = vpow.pop %v535
    %v537 = vmul.f32 %v534, 1.442695
    %v538 = vpow.pop %v537
    %v539 = vadd.f32 %v536, 1.0
    %v540 = vadd.f32 %v538, 1.0
    %v541 = vrcp.pop %v539
    %v542 = vmul.f32 %v539, %v541
    %v543 = vsub.f32 1.0, %v542
    %v544 = vmul.f32 %v541, %v543
    %v545 = vadd.f32 %v541, %v544
    %vm546 = vweird.f32 %v539
    %vm547 = vweird.f32 %v541
    %vm548 = vmor %vm546, %vm547
    %v549 = vsel %vm548, %v541, %v545
    %v550 = vand.u32 2147483647, %v539
    %vm551 = vcmp.eq.f32.partialorder %v550, 8.507059e+37
    %v552 = vand.u32 %v539, 2147483648
    %v553 = vor.u32 1.1754944e-38, %v552
    %v554 = vsel %vm551, %v553, %v549
    %v555 = vmul.f32 1.0, %v554
    %v556 = vrcp.pop %v540
    %v557 = vmul.f32 %v540, %v556
    %v558 = vsub.f32 1.0, %v557
    %v559 = vmul.f32 %v556, %v558
    %v560 = vadd.f32 %v556, %v559
    %vm561 = vweird.f32 %v540
    %vm562 = vweird.f32 %v556
    %vm563 = vmor %vm561, %vm562
    %v564 = vsel %vm563, %v556, %v560
    %v565 = vand.u32 2147483647, %v540
    %vm566 = vcmp.eq.f32.partialorder %v565, 8.507059e+37
    %v567 = vand.u32 %v540, 2147483648
    %v568 = vor.u32 1.1754944e-38, %v567
    %v569 = vsel %vm566, %v568, %v564
    %v570 = vmul.f32 1.0, %v569
    %572 = vset.pattern.permute.xlu0 0
    %573 = vperm.xlu0 %572, %v461
    %v574 = vpop.permute.xlu0 %573
    %577 = vset.pattern.permute.xlu0 0
    %578 = vperm.xlu0 %577, %v476
    %v579 = vpop.permute.xlu0 %578
    %582 = vset.pattern.permute.xlu0 0
    %583 = vperm.xlu0 %582, %v491
    %v584 = vpop.permute.xlu0 %583
    %587 = vset.pattern.permute.xlu0 0
    %588 = vperm.xlu0 %587, %v506
    %v589 = vpop.permute.xlu0 %588
    %v591 = vadd.f32 %v574, %v555
    %v592 = vadd.f32 %v574, %v570
    %v593 = vadd.f32 %v579, %v555
    %v594 = vadd.f32 %v579, %v570
    %v595 = vadd.f32 %v584, %v555
    %v596 = vadd.f32 %v584, %v570
    %v597 = vadd.f32 %v589, %v555
    %v598 = vadd.f32 %v589, %v570
    %v599 = vmul.f32 %v354, %v591
    %v600 = vmul.f32 %v355, %v592
    %v601 = vmul.f32 %v356, %v593
    %v602 = vmul.f32 %v357, %v594
    %v603 = vmul.f32 %v358, %v595
    %v604 = vmul.f32 %v359, %v596
    %v605 = vmul.f32 %v360, %v597
    %v606 = vmul.f32 %v361, %v598
    %s607 = scalar_lea.vmem [#allocation5], 64
    %608 = vst [vmem:[%s607] sm:$0xff] %v599
    %609 = vst [vmem:[%s607 + $0x8] sm:$0xff] %v600
    %610 = vst [vmem:[%s607 + $0x10] sm:$0xff] %v601
    %611 = vst [vmem:[%s607 + $0x18] sm:$0xff] %v602
    %612 = vst [vmem:[%s607 + $0x20] sm:$0xff] %v603
    %613 = vst [vmem:[%s607 + $0x28] sm:$0xff] %v604
    %614 = vst [vmem:[%s607 + $0x30] sm:$0xff] %v605
    %615 = vst [vmem:[%s607 + $0x38] sm:$0xff] %v606
    // Predicated region
    $region30: #{tpu_custom_call.1} parent=1 // pred_check
      _
    $region31: #{tpu_custom_call.1} parent=1 // pred_check_branch
      %617 = sbr.rel (0) target = $region33
    $region32: #{tpu_custom_call.1} parent=1 // pred_region
      %619 = vsyncadd [#allocation4], 0
      %s620 = sshll.u32 [#allocation5], 4
      %s621 = int_to_ptr.vmem [resolvable:$true] %s620
      %s622 = sshll.u32 %s6, 4
      %s623 = int_to_ptr.hbm [resolvable:$true] %s622
      %628 = dma.vmem_to_hbm [thread:$0]  %s621, 2048, %s623, [#allocation4], 256, 256, 16
    $region33: #{tpu_custom_call.1} parent=1 // pred_fallthru
      _
    // Predicated region
    $region34: #{tpu_custom_call.1} parent=1 // pred_check
      _
    $region35: #{tpu_custom_call.1} parent=1 // pred_check_branch
      %630 = sbr.rel (0) target = $region37
    $region36: #{tpu_custom_call.1} parent=1 // pred_region
      %632 = dma.done [#allocation4], 2048
    $region37: #{tpu_custom_call.1} parent=1 // pred_fallthru
      _
    %633 = vsyncpa [#allocation3], 1
    %634 = vsyncpa [#allocation4], 1

</llo_original>
